<compile_context>
chip_gen: v7x
topology: tpu7x:2x2x1
jax: 0.10.0
libtpu: 0.0.40
codegen_flags: <defaults>
</compile_context>

<pallas_src>
import functools

import jax
import jax.numpy as jnp
from jax.experimental import pallas as pl
from jax.experimental.pallas import tpu as pltpu


def _round_up(a, m):
    return (a + m - 1) // m * m


def _cdiv(a, b):
    return -(-a // b)


# Contract the last dim of both operands (a "trans_b" MXU matmul).
_TRANS_B = (((1,), (1,)), ((), ()))


def _dlgn_sf_kernel(x_ref, wg_ref, bg_ref, wv_ref, wl_ref, bl_ref, out_ref,
                    *, depth, width, mxu_dtype):
    """DLGN_SF forward on one batch tile (feature-major inside the kernel).

    x_ref  : (TB, D_in)          batch-major x tile (contiguous HBM block)
    wg_ref : (depth*W, D_in)     fused gate weights, pre-scaled by beta
    bg_ref : (depth*W, 1)        fused gate biases,  pre-scaled by beta
    wv_ref : (depth, W, W)       value-network weights (no bias)
    wl_ref : (W, 1)              last-layer weight as a column
    bl_ref : (1, 1)  [SMEM]      last-layer bias scalar
    out_ref: (1, TB)             sigmoid output, batch on lanes (lane-dense)
    """
    x = x_ref[...].astype(mxu_dtype)                    # (TB, D_in)
    wg = wg_ref[...].astype(mxu_dtype)                  # (depth*W, D_in)

    # One MXU matmul for every gate layer; trans_b keeps the HBM block
    # batch-major while the result lands feature-major (batch on lanes).
    g_all = jax.lax.dot_general(wg, x, _TRANS_B,
                                preferred_element_type=jnp.float32)
    g_all = g_all + bg_ref[...]                          # (depth*W, TB); beta pre-folded

    # Layer 0: previous h is all-ones, so Wv[0] @ ones == row-sums of Wv[0]
    # (cheap XLU reduce, one MXU matmul removed).
    h = jax.nn.sigmoid(g_all[:width, :]) * jnp.sum(wv_ref[0], axis=1,
                                                   keepdims=True)

    # Remaining value layers: (W, W) @ (W, TB) keeps the MXU N dim lane-dense.
    # Sigmoid slices are taken lazily (no full sig_all temporary).
    for i in range(1, depth):
        hv = jnp.dot(wv_ref[i].astype(mxu_dtype), h.astype(mxu_dtype),
                     preferred_element_type=jnp.float32)
        h = jax.nn.sigmoid(g_all[i * width:(i + 1) * width, :]) * hv

    # Last layer Linear(W, 1): VPU multiply + sublane reduce (no 1-wide MXU
    # matmul); result is already lane-dense (1, TB) -> unmasked store.
    y = jnp.sum(h * wl_ref[...], axis=0, keepdims=True) + bl_ref[0, 0]
    out_ref[...] = jax.nn.sigmoid(y)


def prepare_params(wg, bg, wv, wl, bl, *, beta):
    """One-time parameter prep (do at init, not per forward call).

    beta is folded into the gate parameters: sigmoid(beta*(Wx+b)) ==
    sigmoid((beta*W)x + (beta*b)), removing a (depth*W, TB) VALU multiply
    per tile.  Weights stay in f32; MXU-dtype casting is done in-kernel.
    """
    depth, width, dim_in = wg.shape
    wg_all = (beta * wg).reshape(depth * width, dim_in).astype(jnp.float32)
    bg_all = (beta * bg).reshape(depth * width, 1).astype(jnp.float32)
    wl_col = wl.reshape(width, 1).astype(jnp.float32)
    bl_s = bl.reshape(1, 1).astype(jnp.float32)
    return wg_all, bg_all, wv.astype(jnp.float32), wl_col, bl_s


def dlgn_sf_forward(x, wg_all, bg_all, wv, wl_col, bl_s, *,
                    mxu_dtype=jnp.bfloat16, tb_max=8192):
    b, dim_in = x.shape
    depth, width, _ = wv.shape
    assert wg_all.shape == (depth * width, dim_in)

    # Adaptive batch tiling over batch-major HBM blocks (no wrapper transpose).
    if b < 256:
        # Single full-array block: block_shape == array shape, so no (8,128)
        # alignment constraint and no pad copy at all.
        tb, num_tiles = b, 1
    else:
        # At least 2 tiles so v7x's second TensorCore gets work; tiles are a
        # multiple of 128 (aligned x blocks and an unmasked (1, tb) output
        # store), capped at tb_max to bound per-tile VMEM temporaries.
        # (If plain "parallel" doesn't shard across v7x's 2 TCs, switch the
        #  batch axis to pltpu.CORE_PARALLEL.)
        num_tiles = max(2, _cdiv(b, tb_max))
        tb = _round_up(_cdiv(b, num_tiles), 128)
        num_tiles = _cdiv(b, tb)
    bp = num_tiles * tb
    xp = x if bp == b else jnp.pad(x, ((0, bp - b), (0, 0)))  # remainder rows only

    # VMEM budget: double-buffered x tile + double-buffered output row +
    # (depth*W, TB) g_all + h/hv temporaries + resident weights, with 2x
    # headroom.  > v5e's 16 MiB scoped default, < v7x's 64 MiB physical VMEM.
    est = 4 * (2 * tb * dim_in + 2 * tb + depth * width * tb + 3 * width * tb
               + depth * width * (dim_in + 1) + depth * width * width + width + 8)
    vmem_limit = min(max(32 << 20, 2 * est), 48 << 20)

    kernel = functools.partial(_dlgn_sf_kernel, depth=depth, width=width,
                               mxu_dtype=mxu_dtype)

    out = pl.pallas_call(
        kernel,
        out_shape=jax.ShapeDtypeStruct((1, bp), jnp.float32),
        grid=(num_tiles,),
        in_specs=[
            pl.BlockSpec((tb, dim_in), lambda i: (i, 0)),              # x, streamed over batch
            pl.BlockSpec((depth * width, dim_in), lambda i: (0, 0)),   # fused gate weights (resident)
            pl.BlockSpec((depth * width, 1), lambda i: (0, 0)),        # fused gate biases (resident)
            pl.BlockSpec((depth, width, width), lambda i: (0, 0, 0)),  # value weights (resident)
            pl.BlockSpec((width, 1), lambda i: (0, 0)),                # last-layer weight column
            pl.BlockSpec((1, 1), lambda i: (0, 0),
                         memory_space=pltpu.MemorySpace.SMEM),         # last-layer bias scalar
        ],
        out_specs=pl.BlockSpec((1, tb), lambda i: (0, i)),             # lane-dense output row
        compiler_params=pltpu.CompilerParams(
            dimension_semantics=("parallel",),      # megacore-shard batch on v7x
            vmem_limit_bytes=vmem_limit),
    )(xp, wg_all, bg_all, wv, wl_col, bl_s)

    return out[0, :b, None]                                            # (B, 1) like the module


def dlgn_sf_reference(x, wg, bg, wv, wl, bl, *, beta):
    """Pure-JAX reference mirroring the PyTorch forward (PyTorch weight layout)."""
    width = wv.shape[1]
    h = jnp.ones((width,), dtype=jnp.float32)
    for i in range(wg.shape[0]):
        g = x @ wg[i].T + bg[i]
        h = jax.nn.sigmoid(beta * g) * (h @ wv[i].T)
    return jax.nn.sigmoid(h @ wl.T + bl)


def init_params(key, dim_in, width, depth):
    """Deterministic nn.Linear-style uniform init, PyTorch (out, in) layout."""
    ks = jax.random.split(key, 4)

    def lin(k, fan_in, shape):
        bound = 1.0 / float(fan_in) ** 0.5
        return jax.random.uniform(k, shape, jnp.float32, -bound, bound)

    wg = lin(ks[0], dim_in, (depth, width, dim_in))
    bg = lin(jax.random.fold_in(ks[0], 1), dim_in, (depth, width))
    wv = lin(ks[1], width, (depth, width, width))
    wl = lin(ks[2], width, (1, width))
    bl = lin(ks[3], width, (1,))
    return wg, bg, wv, wl, bl


if __name__ == "__main__":
    # Small shapes consistent with the module's forward.
    dim_in, width, depth = 16, 32, 3
    beta = 4.0

    key = jax.random.PRNGKey(0)
    kx, kp = jax.random.split(key)
    wg, bg, wv, wl, bl = init_params(kp, dim_in, width, depth)
    params = prepare_params(wg, bg, wv, wl, bl, beta=beta)   # one-time prep

    # 1) Tiny batch, f32 MXU path: single full-array tile, tight tolerance.
    x_small = jax.random.normal(kx, (8, dim_in), dtype=jnp.float32)
    out32 = jax.block_until_ready(
        dlgn_sf_forward(x_small, *params, mxu_dtype=jnp.float32))
    ref_small = dlgn_sf_reference(x_small, wg, bg, wv, wl, bl, beta=beta)
    assert out32.shape == (8, 1)
    assert jnp.allclose(out32, ref_small, atol=1e-5, rtol=1e-5), "f32 mismatch"

    # 2) Same batch, bf16 MXU operands (default / production path).
    out16 = jax.block_until_ready(
        dlgn_sf_forward(x_small, *params, mxu_dtype=jnp.bfloat16))
    assert jnp.allclose(out16, ref_small, atol=3e-2, rtol=3e-2), "bf16 mismatch"

    # 3) Multi-tile path (>=2 grid steps + remainder padding), bf16.
    x_big = jax.random.normal(jax.random.fold_in(kx, 1), (384, dim_in),
                              dtype=jnp.float32)
    out_big = jax.block_until_ready(
        dlgn_sf_forward(x_big, *params, mxu_dtype=jnp.bfloat16))
    ref_big = dlgn_sf_reference(x_big, wg, bg, wv, wl, bl, beta=beta)
    assert out_big.shape == (384, 1)
    assert jnp.allclose(out_big, ref_big, atol=3e-2, rtol=3e-2), "tiled mismatch"

    print("KERNEL_OK")
</pallas_src>

<mosaic_0001>
module attributes {stable_mosaic.version = 11 : i64} {
  func.func @_dlgn_sf_kernel(%arg0: i32, %arg1: memref<8x16xf32, #tpu.memory_space<vmem>>, %arg2: memref<96x16xf32, #tpu.memory_space<vmem>>, %arg3: memref<96x1xf32, #tpu.memory_space<vmem>>, %arg4: memref<3x32x32xf32, #tpu.memory_space<vmem>>, %arg5: memref<32x1xf32, #tpu.memory_space<vmem>>, %arg6: memref<1x1xf32, #tpu.memory_space<smem>>, %arg7: memref<1x8xf32, #tpu.memory_space<vmem>>) attributes {dimension_semantics = [#tpu.dimension_semantics<parallel>], iteration_bounds = array<i64: 1>, scalar_prefetch = 0 : i64, scratch_operands = 0 : i64, tpu.core_type = #tpu.core_type<tc>, window_params = [{transform_indices = @transform_0, window_bounds = array<i64: 8, 16>}, {pipeline_mode = #tpu.pipeline_mode<synchronous>, transform_indices = @transform_1, window_bounds = array<i64: 96, 16>}, {pipeline_mode = #tpu.pipeline_mode<synchronous>, transform_indices = @transform_2, window_bounds = array<i64: 96, 1>}, {pipeline_mode = #tpu.pipeline_mode<synchronous>, transform_indices = @transform_3, window_bounds = array<i64: 3, 32, 32>}, {pipeline_mode = #tpu.pipeline_mode<synchronous>, transform_indices = @transform_4, window_bounds = array<i64: 32, 1>}, {transform_indices = @transform_5, window_bounds = array<i64: 1, 1>}, {transform_indices = @transform_6, window_bounds = array<i64: 1, 8>}]} {
    %c0 = arith.constant 0 : index
    %c0_0 = arith.constant 0 : index
    %0 = vector.load %arg1[%c0, %c0_0] : memref<8x16xf32, #tpu.memory_space<vmem>>, vector<8x16xf32>
    %c0_1 = arith.constant 0 : index
    %c0_2 = arith.constant 0 : index
    %1 = vector.load %arg2[%c0_1, %c0_2] : memref<96x16xf32, #tpu.memory_space<vmem>>, vector<96x16xf32>
    %cst = arith.constant dense<0.000000e+00> : vector<96x8xf32>
    %2 = tpu.matmul %1, %0, %cst {dimension_numbers = #tpu.dot_dimension_numbers<[1], [1], [0], [0], [0, 0, 1, 0], [], []>} : vector<96x16xf32>, vector<8x16xf32>, vector<96x8xf32> -> vector<96x8xf32>
    %c0_3 = arith.constant 0 : index
    %c0_4 = arith.constant 0 : index
    %3 = vector.load %arg3[%c0_3, %c0_4] : memref<96x1xf32, #tpu.memory_space<vmem>>, vector<96x1xf32>
    %4 = vector.broadcast %3 : vector<96x1xf32> to vector<96x8xf32>
    %5 = arith.addf %2, %4 : vector<96x8xf32>
    %6 = vector.extract_strided_slice %5 {offsets = [0, 0], sizes = [32, 8], strides = [1, 1]} : vector<96x8xf32> to vector<32x8xf32>
    %7 = arith.negf %6 : vector<32x8xf32>
    %8 = math.exp %7 : vector<32x8xf32>
    %cst_5 = arith.constant 1.000000e+00 : f32
    %9 = vector.broadcast %cst_5 : f32 to vector<32x8xf32>
    %10 = arith.addf %9, %8 : vector<32x8xf32>
    %11 = arith.divf %9, %10 : vector<32x8xf32>
    %c0_6 = arith.constant 0 : index
    %c0_7 = arith.constant 0 : index
    %c0_8 = arith.constant 0 : index
    %12 = vector.load %arg4[%c0_6, %c0_7, %c0_8] : memref<3x32x32xf32, #tpu.memory_space<vmem>>, vector<1x32x32xf32>
    %13 = vector.shape_cast %12 : vector<1x32x32xf32> to vector<32x32xf32>
    %cst_9 = arith.constant dense<0.000000e+00> : vector<32xf32>
    %14 = vector.multi_reduction <add>, %13, %cst_9 [1] : vector<32x32xf32> to vector<32xf32>
    %15 = vector.shape_cast %14 : vector<32xf32> to vector<32x1xf32>
    %16 = vector.broadcast %15 : vector<32x1xf32> to vector<32x8xf32>
    %17 = arith.mulf %11, %16 : vector<32x8xf32>
    %c1 = arith.constant 1 : index
    %c0_10 = arith.constant 0 : index
    %c0_11 = arith.constant 0 : index
    %18 = vector.load %arg4[%c1, %c0_10, %c0_11] : memref<3x32x32xf32, #tpu.memory_space<vmem>>, vector<1x32x32xf32>
    %19 = vector.shape_cast %18 : vector<1x32x32xf32> to vector<32x32xf32>
    %cst_12 = arith.constant dense<0.000000e+00> : vector<32x8xf32>
    %20 = tpu.matmul %19, %17, %cst_12 {dimension_numbers = #tpu.dot_dimension_numbers<[1], [0], [0], [1], [0, 0, 1, 1], [], []>} : vector<32x32xf32>, vector<32x8xf32>, vector<32x8xf32> -> vector<32x8xf32>
    %21 = vector.extract_strided_slice %5 {offsets = [32, 0], sizes = [32, 8], strides = [1, 1]} : vector<96x8xf32> to vector<32x8xf32>
    %22 = arith.negf %21 : vector<32x8xf32>
    %23 = math.exp %22 : vector<32x8xf32>
    %cst_13 = arith.constant 1.000000e+00 : f32
    %24 = vector.broadcast %cst_13 : f32 to vector<32x8xf32>
    %25 = arith.addf %24, %23 : vector<32x8xf32>
    %26 = arith.divf %24, %25 : vector<32x8xf32>
    %27 = arith.mulf %26, %20 : vector<32x8xf32>
    %c2 = arith.constant 2 : index
    %c0_14 = arith.constant 0 : index
    %c0_15 = arith.constant 0 : index
    %28 = vector.load %arg4[%c2, %c0_14, %c0_15] : memref<3x32x32xf32, #tpu.memory_space<vmem>>, vector<1x32x32xf32>
    %29 = vector.shape_cast %28 : vector<1x32x32xf32> to vector<32x32xf32>
    %cst_16 = arith.constant dense<0.000000e+00> : vector<32x8xf32>
    %30 = tpu.matmul %29, %27, %cst_16 {dimension_numbers = #tpu.dot_dimension_numbers<[1], [0], [0], [1], [0, 0, 1, 1], [], []>} : vector<32x32xf32>, vector<32x8xf32>, vector<32x8xf32> -> vector<32x8xf32>
    %31 = vector.extract_strided_slice %5 {offsets = [64, 0], sizes = [32, 8], strides = [1, 1]} : vector<96x8xf32> to vector<32x8xf32>
    %32 = arith.negf %31 : vector<32x8xf32>
    %33 = math.exp %32 : vector<32x8xf32>
    %cst_17 = arith.constant 1.000000e+00 : f32
    %34 = vector.broadcast %cst_17 : f32 to vector<32x8xf32>
    %35 = arith.addf %34, %33 : vector<32x8xf32>
    %36 = arith.divf %34, %35 : vector<32x8xf32>
    %37 = arith.mulf %36, %30 : vector<32x8xf32>
    %c0_18 = arith.constant 0 : index
    %c0_19 = arith.constant 0 : index
    %38 = vector.load %arg5[%c0_18, %c0_19] : memref<32x1xf32, #tpu.memory_space<vmem>>, vector<32x1xf32>
    %39 = vector.broadcast %38 : vector<32x1xf32> to vector<32x8xf32>
    %40 = arith.mulf %37, %39 : vector<32x8xf32>
    %cst_20 = arith.constant dense<0.000000e+00> : vector<8xf32>
    %41 = vector.multi_reduction <add>, %40, %cst_20 [0] : vector<32x8xf32> to vector<8xf32>
    %42 = vector.shape_cast %41 : vector<8xf32> to vector<1x8xf32>
    %c0_21 = arith.constant 0 : index
    %c0_22 = arith.constant 0 : index
    %43 = memref.load %arg6[%c0_21, %c0_22] : memref<1x1xf32, #tpu.memory_space<smem>>
    %44 = vector.broadcast %43 : f32 to vector<1x8xf32>
    %45 = arith.addf %42, %44 : vector<1x8xf32>
    %46 = arith.negf %45 : vector<1x8xf32>
    %47 = math.exp %46 : vector<1x8xf32>
    %cst_23 = arith.constant 1.000000e+00 : f32
    %48 = vector.broadcast %cst_23 : f32 to vector<1x8xf32>
    %49 = arith.addf %48, %47 : vector<1x8xf32>
    %50 = arith.divf %48, %49 : vector<1x8xf32>
    %c0_24 = arith.constant 0 : index
    %c0_25 = arith.constant 0 : index
    %51 = vector.load %arg7[%c0_24, %c0_25] : memref<1x8xf32, #tpu.memory_space<vmem>>, vector<1x8xf32>
    tpu.vector_store %arg7[%c0_24, %c0_25], %50 {strides = array<i32>} : memref<1x8xf32, #tpu.memory_space<vmem>>, vector<1x8xf32>,
    return
  }
  func.func @transform_0(%arg0: i32) -> (i32, i32) {
    %c0_i32 = arith.constant 0 : i32
    %c0_i32_0 = arith.constant 0 : i32
    return %arg0, %c0_i32 : i32, i32
  }
  func.func @transform_1(%arg0: i32) -> (i32, i32) {
    %c0_i32 = arith.constant 0 : i32
    %c0_i32_0 = arith.constant 0 : i32
    %c0_i32_1 = arith.constant 0 : i32
    return %c0_i32, %c0_i32_0 : i32, i32
  }
  func.func @transform_2(%arg0: i32) -> (i32, i32) {
    %c0_i32 = arith.constant 0 : i32
    %c0_i32_0 = arith.constant 0 : i32
    %c0_i32_1 = arith.constant 0 : i32
    return %c0_i32, %c0_i32_0 : i32, i32
  }
  func.func @transform_3(%arg0: i32) -> (i32, i32, i32) {
    %c0_i32 = arith.constant 0 : i32
    %c0_i32_0 = arith.constant 0 : i32
    %c0_i32_1 = arith.constant 0 : i32
    %c0_i32_2 = arith.constant 0 : i32
    return %c0_i32, %c0_i32_0, %c0_i32_1 : i32, i32, i32
  }
  func.func @transform_4(%arg0: i32) -> (i32, i32) {
    %c0_i32 = arith.constant 0 : i32
    %c0_i32_0 = arith.constant 0 : i32
    %c0_i32_1 = arith.constant 0 : i32
    return %c0_i32, %c0_i32_0 : i32, i32
  }
  func.func @transform_5(%arg0: i32) -> (i32, i32) {
    %c0_i32 = arith.constant 0 : i32
    %c0_i32_0 = arith.constant 0 : i32
    %c0_i32_1 = arith.constant 0 : i32
    return %c0_i32, %c0_i32_0 : i32, i32
  }
  func.func @transform_6(%arg0: i32) -> (i32, i32) {
    %c0_i32 = arith.constant 0 : i32
    %c0_i32_0 = arith.constant 0 : i32
    return %c0_i32, %arg0 : i32, i32
  }
}

</mosaic_0001>

<llo_original>
// kernel: tpu_custom_call.1
$region0: #{tpu_custom_call.1}
  #allocation0 [shape = 'u32[]', space=smem, size = 0x4, offset = 0x4, fixed_abs, tag = 'smem constant byte address 0x4 - core index']
  #allocation1 [shape = 'u32[144,128]{1,0:T(1,128)}', space=vmem, size = 0x12000, scoped, tag = 'internal scratch']
  #allocation2 [shape = 'f32[1,1]{1,0:T(1,128)S(6)}', space=smem, size = 0x200, scoped, tag = 'scoped memory for tpu_custom_call.1']
  %s0 = inlined_call_operand.vmem [shape: f32[8,16], index: 0, kind: input, shape index: {}]
  %s1 = inlined_call_operand.vmem [shape: f32[96,16], index: 1, kind: input, shape index: {}]
  %s2 = inlined_call_operand.vmem [shape: f32[96,1], index: 2, kind: input, shape index: {}]
  %s3 = inlined_call_operand.vmem [shape: f32[3,32,32], index: 3, kind: input, shape index: {}]
  %s4 = inlined_call_operand.vmem [shape: f32[32,1], index: 4, kind: input, shape index: {}]
  %s5 = inlined_call_operand.<no memory space> [shape: f32[1,1], index: 5, kind: input, shape index: {}]
  %s6 = inlined_call_operand.hbm [shape: f32[1,8], index: 6, kind: output, shape index: {}]
  %s7 = sld [smem:[#allocation0]]
  $region34: #{tpu_custom_call.1} parent=0
    _
  %s9 = ssub.s32 1, %s7
  %s10 = scalar_select 0, %s9, %s7
  %11 = sst [smem:[#allocation2]] %s5
  $region1: #{tpu_custom_call.1} parent=0
    #allocation3 [shape = 'u8[512]{0}', space=vmem, size = 0x400, scoped, tag = 'output window, operand 0, single buffered']
    #allocation4 [shape = 's32[1]{0}', space=sflag, size = 0x4, scoped, tag = 'scoped memory for tpu_custom_call.1']
    %12 = vsyncpa [#allocation4], 0
    // Predicated region
    $region2: #{tpu_custom_call.1} parent=1 // pred_check
      _
    $region3: #{tpu_custom_call.1} parent=1 // pred_check_branch
      %14 = sbr.rel (0) target = $region5
    $region4: #{tpu_custom_call.1} parent=1 // pred_region
      _
    $region5: #{tpu_custom_call.1} parent=1 // pred_fallthru
      _
    // Predicated region
    $region6: #{tpu_custom_call.1} parent=1 // pred_check
      _
    $region7: #{tpu_custom_call.1} parent=1 // pred_check_branch
      %16 = sbr.rel (0) target = $region9
    $region8: #{tpu_custom_call.1} parent=1 // pred_region
      _
    $region9: #{tpu_custom_call.1} parent=1 // pred_fallthru
      _
    // Predicated region
    $region10: #{tpu_custom_call.1} parent=1 // pred_check
      _
    $region11: #{tpu_custom_call.1} parent=1 // pred_check_branch
      %18 = sbr.rel (0) target = $region13
    $region12: #{tpu_custom_call.1} parent=1 // pred_region
      _
    $region13: #{tpu_custom_call.1} parent=1 // pred_fallthru
      _
    // Predicated region
    $region14: #{tpu_custom_call.1} parent=1 // pred_check
      _
    $region15: #{tpu_custom_call.1} parent=1 // pred_check_branch
      %20 = sbr.rel (0) target = $region17
    $region16: #{tpu_custom_call.1} parent=1 // pred_region
      _
    $region17: #{tpu_custom_call.1} parent=1 // pred_fallthru
      _
    // Predicated region
    $region18: #{tpu_custom_call.1} parent=1 // pred_check
      _
    $region19: #{tpu_custom_call.1} parent=1 // pred_check_branch
      %22 = sbr.rel (0) target = $region21
    $region20: #{tpu_custom_call.1} parent=1 // pred_region
      _
    $region21: #{tpu_custom_call.1} parent=1 // pred_fallthru
      _
    // Predicated region
    $region22: #{tpu_custom_call.1} parent=1 // pred_check
      _
    $region23: #{tpu_custom_call.1} parent=1 // pred_check_branch
      %24 = sbr.rel (0) target = $region25
    $region24: #{tpu_custom_call.1} parent=1 // pred_region
      _
    $region25: #{tpu_custom_call.1} parent=1 // pred_fallthru
      _
    %v25 = vld [vmem:[%s0] sm:$0xff]
    %v26 = vld [vmem:[%s1] sm:$0xff]
    %v27 = vld [vmem:[%s1 + $0x8] sm:$0xff]
    %v28 = vld [vmem:[%s1 + $0x10] sm:$0xff]
    %v29 = vld [vmem:[%s1 + $0x18] sm:$0xff]
    %v30 = vld [vmem:[%s1 + $0x20] sm:$0xff]
    %v31 = vld [vmem:[%s1 + $0x28] sm:$0xff]
    %v32 = vld [vmem:[%s1 + $0x30] sm:$0xff]
    %v33 = vld [vmem:[%s1 + $0x38] sm:$0xff]
    %v34 = vld [vmem:[%s1 + $0x40] sm:$0xff]
    %v35 = vld [vmem:[%s1 + $0x48] sm:$0xff]
    %v36 = vld [vmem:[%s1 + $0x50] sm:$0xff]
    %v37 = vld [vmem:[%s1 + $0x58] sm:$0xff]
    %v38 = vld [vmem:[%s2] sm:$0xff]
    %v39 = vld [vmem:[%s2 + $0x8] sm:$0xff]
    %v40 = vld [vmem:[%s2 + $0x10] sm:$0xff]
    %v41 = vld [vmem:[%s2 + $0x18] sm:$0xff]
    %v42 = vld [vmem:[%s2 + $0x20] sm:$0xff]
    %v43 = vld [vmem:[%s2 + $0x28] sm:$0xff]
    %v44 = vld [vmem:[%s2 + $0x30] sm:$0xff]
    %v45 = vld [vmem:[%s2 + $0x38] sm:$0xff]
    %v46 = vld [vmem:[%s2 + $0x40] sm:$0xff]
    %v47 = vld [vmem:[%s2 + $0x48] sm:$0xff]
    %v48 = vld [vmem:[%s2 + $0x50] sm:$0xff]
    %v49 = vld [vmem:[%s2 + $0x58] sm:$0xff]
    %51 = vset.pattern.permute.xlu0 0
    %52 = vperm.xlu0 %51, %v38
    %v53 = vpop.permute.xlu0 %52
    %56 = vset.pattern.permute.xlu0 0
    %57 = vperm.xlu0 %56, %v39
    %v58 = vpop.permute.xlu0 %57
    %61 = vset.pattern.permute.xlu0 0
    %62 = vperm.xlu0 %61, %v40
    %v63 = vpop.permute.xlu0 %62
    %66 = vset.pattern.permute.xlu0 0
    %67 = vperm.xlu0 %66, %v41
    %v68 = vpop.permute.xlu0 %67
    %71 = vset.pattern.permute.xlu0 0
    %72 = vperm.xlu0 %71, %v42
    %v73 = vpop.permute.xlu0 %72
    %76 = vset.pattern.permute.xlu0 0
    %77 = vperm.xlu0 %76, %v43
    %v78 = vpop.permute.xlu0 %77
    %81 = vset.pattern.permute.xlu0 0
    %82 = vperm.xlu0 %81, %v44
    %v83 = vpop.permute.xlu0 %82
    %86 = vset.pattern.permute.xlu0 0
    %87 = vperm.xlu0 %86, %v45
    %v88 = vpop.permute.xlu0 %87
    %91 = vset.pattern.permute.xlu0 0
    %92 = vperm.xlu0 %91, %v46
    %v93 = vpop.permute.xlu0 %92
    %96 = vset.pattern.permute.xlu0 0
    %97 = vperm.xlu0 %96, %v47
    %v98 = vpop.permute.xlu0 %97
    %101 = vset.pattern.permute.xlu0 0
    %102 = vperm.xlu0 %101, %v48
    %v103 = vpop.permute.xlu0 %102
    %106 = vset.pattern.permute.xlu0 0
    %107 = vperm.xlu0 %106, %v49
    %v108 = vpop.permute.xlu0 %107
    %vm110 = vcmask 130048
    %v112 = vsel %vm110, %v26, 0
    %v115 = vsel %vm110, %v27, 0
    %v118 = vsel %vm110, %v28, 0
    %v121 = vsel %vm110, %v29, 0
    %v124 = vsel %vm110, %v30, 0
    %v127 = vsel %vm110, %v31, 0
    %v130 = vsel %vm110, %v32, 0
    %v133 = vsel %vm110, %v33, 0
    %v136 = vsel %vm110, %v34, 0
    %v139 = vsel %vm110, %v35, 0
    %v142 = vsel %vm110, %v36, 0
    %v145 = vsel %vm110, %v37, 0
    %v148 = vsel %vm110, %v25, 0
    %150 = vmatprep.subr.mxu0 0.0
    %151 = vmatpush1.xpose.msra.mxu0 %v148
    %152 = vmatprep.subr.mxu0 0.0
    %153 = vmatpush1.xpose.msra.mxu0 0.0
    %154 = vmatprep.subr.mxu0 0.0
    %155 = vmatpush1.xpose.msra.mxu0 0.0
    %156 = vmatprep.subr.mxu0 0.0
    %157 = vmatpush1.xpose.msra.mxu0 0.0
    %158 = vmatprep.subr.mxu0 0.0
    %159 = vmatpush1.xpose.msra.mxu0 0.0
    %160 = vmatprep.subr.mxu0 0.0
    %161 = vmatpush1.xpose.msra.mxu0 0.0
    %162 = vmatprep.subr.mxu0 0.0
    %163 = vmatpush1.xpose.msra.mxu0 0.0
    %164 = vmatprep.subr.mxu0 0.0
    %165 = vmatpush1.xpose.msra.mxu0 0.0
    %166 = vmatprep.subr.mxu0 0.0
    %167 = vmatpush1.xpose.msra.mxu0 0.0
    %168 = vmatprep.subr.mxu0 0.0
    %169 = vmatpush1.xpose.msra.mxu0 0.0
    %170 = vmatprep.subr.mxu0 0.0
    %171 = vmatpush1.xpose.msra.mxu0 0.0
    %172 = vmatprep.subr.mxu0 0.0
    %173 = vmatpush1.xpose.msra.mxu0 0.0
    %174 = vmatprep.subr.mxu0 0.0
    %175 = vmatpush1.xpose.msra.mxu0 0.0
    %176 = vmatprep.subr.mxu0 0.0
    %177 = vmatpush1.xpose.msra.mxu0 0.0
    %178 = vmatprep.subr.mxu0 0.0
    %179 = vmatpush1.xpose.msra.mxu0 0.0
    %180 = vmatprep.subr.mxu0 0.0
    %181 = vmatpush1.xpose.msra.mxu0 0.0
    %182 = vmatprep.subr.mxu0 0.0
    %183 = vmatpush1.xpose.msra.mxu0 0.0
    %184 = vmatprep.subr.mxu0 0.0
    %185 = vmatpush1.xpose.msra.mxu0 0.0
    %186 = vmatprep.subr.mxu0 0.0
    %187 = vmatpush1.xpose.msra.mxu0 0.0
    %188 = vmatprep.subr.mxu0 0.0
    %189 = vmatpush1.xpose.msra.mxu0 0.0
    %190 = vmatprep.subr.mxu0 0.0
    %191 = vmatpush1.xpose.msra.mxu0 0.0
    %192 = vmatprep.subr.mxu0 0.0
    %193 = vmatpush1.xpose.msra.mxu0 0.0
    %194 = vmatprep.subr.mxu0 0.0
    %195 = vmatpush1.xpose.msra.mxu0 0.0
    %196 = vmatprep.subr.mxu0 0.0
    %197 = vmatpush1.xpose.msra.mxu0 0.0
    %198 = vmatprep.subr.mxu0 0.0
    %199 = vmatpush1.xpose.msra.mxu0 0.0
    %200 = vmatprep.subr.mxu0 0.0
    %201 = vmatpush1.xpose.msra.mxu0 0.0
    %202 = vmatprep.subr.mxu0 0.0
    %203 = vmatpush1.xpose.msra.mxu0 0.0
    %204 = vmatprep.subr.mxu0 0.0
    %205 = vmatpush1.xpose.msra.mxu0 0.0
    %206 = vmatprep.subr.mxu0 0.0
    %207 = vmatpush1.xpose.msra.mxu0 0.0
    %208 = vmatprep.subr.mxu0 0.0
    %209 = vmatpush1.xpose.msra.mxu0 0.0
    %210 = vmatprep.subr.mxu0 0.0
    %211 = vmatpush1.xpose.msra.mxu0 0.0
    %212 = vmatprep.subr.mxu0 0.0
    %213 = vmatpush1.xpose.msra.mxu0 0.0
    %214 = vmatprep.mubr.f32.mxu0 0.0
    %215 = vmatmul.mubr.f32.gmra.mrb[0].mxu0 %v112
    %v216 = vpop.f32.mrb[0].mxu0
    %v217 = vadd.f32 %v53, %v216
    %v218 = vpop.f32.mrb[0].mxu0
    %219 = vmatprep.mubr.f32.mxu0 0.0
    %220 = vmatmul.mubr.f32.gmra.mrb[0].mxu0 %v115
    %v221 = vpop.f32.mrb[0].mxu0
    %v222 = vadd.f32 %v58, %v221
    %v223 = vpop.f32.mrb[0].mxu0
    %224 = vmatprep.mubr.f32.mxu0 0.0
    %225 = vmatmul.mubr.f32.gmra.mrb[0].mxu0 %v118
    %v226 = vpop.f32.mrb[0].mxu0
    %v227 = vadd.f32 %v63, %v226
    %v228 = vpop.f32.mrb[0].mxu0
    %229 = vmatprep.mubr.f32.mxu0 0.0
    %230 = vmatmul.mubr.f32.gmra.mrb[0].mxu0 %v121
    %v231 = vpop.f32.mrb[0].mxu0
    %v232 = vadd.f32 %v68, %v231
    %v233 = vpop.f32.mrb[0].mxu0
    %234 = vmatprep.mubr.f32.mxu0 0.0
    %235 = vmatmul.mubr.f32.gmra.mrb[0].mxu0 %v124
    %v236 = vpop.f32.mrb[0].mxu0
    %v237 = vadd.f32 %v73, %v236
    %v238 = vpop.f32.mrb[0].mxu0
    %239 = vmatprep.mubr.f32.mxu0 0.0
    %240 = vmatmul.mubr.f32.gmra.mrb[0].mxu0 %v127
    %v241 = vpop.f32.mrb[0].mxu0
    %v242 = vadd.f32 %v78, %v241
    %v243 = vpop.f32.mrb[0].mxu0
    %244 = vmatprep.mubr.f32.mxu0 0.0
    %245 = vmatmul.mubr.f32.gmra.mrb[0].mxu0 %v130
    %v246 = vpop.f32.mrb[0].mxu0
    %v247 = vadd.f32 %v83, %v246
    %v248 = vpop.f32.mrb[0].mxu0
    %249 = vmatprep.mubr.f32.mxu0 0.0
    %250 = vmatmul.mubr.f32.gmra.mrb[0].mxu0 %v133
    %v251 = vpop.f32.mrb[0].mxu0
    %v252 = vadd.f32 %v88, %v251
    %v253 = vpop.f32.mrb[0].mxu0
    %254 = vmatprep.mubr.f32.mxu0 0.0
    %255 = vmatmul.mubr.f32.gmra.mrb[0].mxu0 %v136
    %v256 = vpop.f32.mrb[0].mxu0
    %v257 = vadd.f32 %v93, %v256
    %v258 = vpop.f32.mrb[0].mxu0
    %259 = vmatprep.mubr.f32.mxu0 0.0
    %260 = vmatmul.mubr.f32.gmra.mrb[0].mxu0 %v139
    %v261 = vpop.f32.mrb[0].mxu0
    %v262 = vadd.f32 %v98, %v261
    %v263 = vpop.f32.mrb[0].mxu0
    %264 = vmatprep.mubr.f32.mxu0 0.0
    %265 = vmatmul.mubr.f32.gmra.mrb[0].mxu0 %v142
    %v266 = vpop.f32.mrb[0].mxu0
    %v267 = vadd.f32 %v103, %v266
    %v268 = vpop.f32.mrb[0].mxu0
    %269 = vmatprep.mubr.f32.mxu0 0.0
    %270 = vmatmul.mubr.f32.gmra.mrb[0].mxu0 %v145
    %v271 = vpop.f32.mrb[0].mxu0
    %v272 = vadd.f32 %v108, %v271
    %v273 = vpop.f32.mrb[0].mxu0
    %274 = vdwg.mxu0
    %v275 = vxor.u32 %v217, 2147483648
    %v276 = vxor.u32 %v222, 2147483648
    %v277 = vxor.u32 %v227, 2147483648
    %v278 = vxor.u32 %v232, 2147483648
    %v279 = vmul.f32 %v275, 1.442695
    %v280 = vpow.pop %v279
    %v281 = vmul.f32 %v276, 1.442695
    %v282 = vpow.pop %v281
    %v283 = vmul.f32 %v277, 1.442695
    %v284 = vpow.pop %v283
    %v285 = vmul.f32 %v278, 1.442695
    %v286 = vpow.pop %v285
    %v287 = vadd.f32 %v280, 1.0
    %v288 = vadd.f32 %v282, 1.0
    %v289 = vadd.f32 %v284, 1.0
    %v290 = vadd.f32 %v286, 1.0
    %v291 = vrcp.pop %v287
    %v292 = vmul.f32 1.0, %v291
    %v293 = vrcp.pop %v288
    %v294 = vmul.f32 1.0, %v293
    %v295 = vrcp.pop %v289
    %v296 = vmul.f32 1.0, %v295
    %v297 = vrcp.pop %v290
    %v298 = vmul.f32 1.0, %v297
    %v299 = vld [vmem:[%s3] sm:$0xff]
    %v300 = vld [vmem:[%s3 + $0x8] sm:$0xff]
    %v301 = vld [vmem:[%s3 + $0x10] sm:$0xff]
    %v302 = vld [vmem:[%s3 + $0x18] sm:$0xff]
    %vm303 = vcmask 261120
    %v304 = vsel %vm303, %v299, 0.0
    %305 = vadd.xlane.f32.xlu0 %v304
    %v306 = vpop.xlane.xlu0 %305
    %v307 = vsel %vm303, %v300, 0.0
    %308 = vadd.xlane.f32.xlu0 %v307
    %v309 = vpop.xlane.xlu0 %308
    %v310 = vsel %vm303, %v301, 0.0
    %311 = vadd.xlane.f32.xlu0 %v310
    %v312 = vpop.xlane.xlu0 %311
    %v313 = vsel %vm303, %v302, 0.0
    %314 = vadd.xlane.f32.xlu0 %v313
    %v315 = vpop.xlane.xlu0 %314
    %v316 = vmul.f32 %v292, %v306
    %v317 = vmul.f32 %v294, %v309
    %v318 = vmul.f32 %v296, %v312
    %v319 = vmul.f32 %v298, %v315
    %s320 = scalar_lea.vmem %s3, 32
    %v321 = vld [vmem:[%s320] sm:$0xff]
    %v322 = vld [vmem:[%s320 + $0x8] sm:$0xff]
    %v323 = vld [vmem:[%s320 + $0x10] sm:$0xff]
    %v324 = vld [vmem:[%s320 + $0x18] sm:$0xff]
    %v326 = vsel %vm303, %v321, 0
    %v329 = vsel %vm303, %v322, 0
    %v332 = vsel %vm303, %v323, 0
    %v335 = vsel %vm303, %v324, 0
    %337 = vmatprep.subr.mxu0 0.0
    %338 = vmatpush1.msra.mxu0 %v316
    %339 = vmatprep.subr.mxu0 0.0
    %340 = vmatpush1.msra.mxu0 %v317
    %341 = vmatprep.subr.mxu0 0.0
    %342 = vmatpush1.msra.mxu0 %v318
    %343 = vmatprep.subr.mxu0 0.0
    %344 = vmatpush1.msra.mxu0 %v319
    %345 = vmatprep.subr.mxu0 0.0
    %346 = vmatpush1.msra.mxu0 0.0
    %347 = vmatprep.subr.mxu0 0.0
    %348 = vmatpush1.msra.mxu0 0.0
    %349 = vmatprep.subr.mxu0 0.0
    %350 = vmatpush1.msra.mxu0 0.0
    %351 = vmatprep.subr.mxu0 0.0
    %352 = vmatpush1.msra.mxu0 0.0
    %353 = vmatprep.subr.mxu0 0.0
    %354 = vmatpush1.msra.mxu0 0.0
    %355 = vmatprep.subr.mxu0 0.0
    %356 = vmatpush1.msra.mxu0 0.0
    %357 = vmatprep.subr.mxu0 0.0
    %358 = vmatpush1.msra.mxu0 0.0
    %359 = vmatprep.subr.mxu0 0.0
    %360 = vmatpush1.msra.mxu0 0.0
    %361 = vmatprep.subr.mxu0 0.0
    %362 = vmatpush1.msra.mxu0 0.0
    %363 = vmatprep.subr.mxu0 0.0
    %364 = vmatpush1.msra.mxu0 0.0
    %365 = vmatprep.subr.mxu0 0.0
    %366 = vmatpush1.msra.mxu0 0.0
    %367 = vmatprep.subr.mxu0 0.0
    %368 = vmatpush1.msra.mxu0 0.0
    %369 = vmatprep.subr.mxu0 0.0
    %370 = vmatpush1.msra.mxu0 0.0
    %371 = vmatprep.subr.mxu0 0.0
    %372 = vmatpush1.msra.mxu0 0.0
    %373 = vmatprep.subr.mxu0 0.0
    %374 = vmatpush1.msra.mxu0 0.0
    %375 = vmatprep.subr.mxu0 0.0
    %376 = vmatpush1.msra.mxu0 0.0
    %377 = vmatprep.subr.mxu0 0.0
    %378 = vmatpush1.msra.mxu0 0.0
    %379 = vmatprep.subr.mxu0 0.0
    %380 = vmatpush1.msra.mxu0 0.0
    %381 = vmatprep.subr.mxu0 0.0
    %382 = vmatpush1.msra.mxu0 0.0
    %383 = vmatprep.subr.mxu0 0.0
    %384 = vmatpush1.msra.mxu0 0.0
    %385 = vmatprep.subr.mxu0 0.0
    %386 = vmatpush1.msra.mxu0 0.0
    %387 = vmatprep.subr.mxu0 0.0
    %388 = vmatpush1.msra.mxu0 0.0
    %389 = vmatprep.subr.mxu0 0.0
    %390 = vmatpush1.msra.mxu0 0.0
    %391 = vmatprep.subr.mxu0 0.0
    %392 = vmatpush1.msra.mxu0 0.0
    %393 = vmatprep.subr.mxu0 0.0
    %394 = vmatpush1.msra.mxu0 0.0
    %395 = vmatprep.subr.mxu0 0.0
    %396 = vmatpush1.msra.mxu0 0.0
    %397 = vmatprep.subr.mxu0 0.0
    %398 = vmatpush1.msra.mxu0 0.0
    %399 = vmatprep.subr.mxu0 0.0
    %400 = vmatpush1.msra.mxu0 0.0
    %401 = vmatprep.mubr.f32.mxu0 0.0
    %402 = vmatmul.mubr.f32.gmra.mrb[0].mxu0 %v326
    %v403 = vpop.f32.mrb[0].mxu0
    %v404 = vadd.f32 0.0, %v403
    %v405 = vpop.f32.mrb[0].mxu0
    %406 = vmatprep.mubr.f32.mxu0 0.0
    %407 = vmatmul.mubr.f32.gmra.mrb[0].mxu0 %v329
    %v408 = vpop.f32.mrb[0].mxu0
    %v409 = vadd.f32 0.0, %v408
    %v410 = vpop.f32.mrb[0].mxu0
    %411 = vmatprep.mubr.f32.mxu0 0.0
    %412 = vmatmul.mubr.f32.gmra.mrb[0].mxu0 %v332
    %v413 = vpop.f32.mrb[0].mxu0
    %v414 = vadd.f32 0.0, %v413
    %v415 = vpop.f32.mrb[0].mxu0
    %416 = vmatprep.mubr.f32.mxu0 0.0
    %417 = vmatmul.mubr.f32.gmra.mrb[0].mxu0 %v335
    %v418 = vpop.f32.mrb[0].mxu0
    %v419 = vadd.f32 0.0, %v418
    %v420 = vpop.f32.mrb[0].mxu0
    %421 = vdwg.mxu0
    %v422 = vxor.u32 %v237, 2147483648
    %v423 = vxor.u32 %v242, 2147483648
    %v424 = vxor.u32 %v247, 2147483648
    %v425 = vxor.u32 %v252, 2147483648
    %v426 = vmul.f32 %v422, 1.442695
    %v427 = vpow.pop %v426
    %v428 = vmul.f32 %v423, 1.442695
    %v429 = vpow.pop %v428
    %v430 = vmul.f32 %v424, 1.442695
    %v431 = vpow.pop %v430
    %v432 = vmul.f32 %v425, 1.442695
    %v433 = vpow.pop %v432
    %v434 = vadd.f32 %v427, 1.0
    %v435 = vadd.f32 %v429, 1.0
    %v436 = vadd.f32 %v431, 1.0
    %v437 = vadd.f32 %v433, 1.0
    %v438 = vrcp.pop %v434
    %v439 = vmul.f32 1.0, %v438
    %v440 = vrcp.pop %v435
    %v441 = vmul.f32 1.0, %v440
    %v442 = vrcp.pop %v436
    %v443 = vmul.f32 1.0, %v442
    %v444 = vrcp.pop %v437
    %v445 = vmul.f32 1.0, %v444
    %v446 = vmul.f32 %v439, %v404
    %v447 = vmul.f32 %v441, %v409
    %v448 = vmul.f32 %v443, %v414
    %v449 = vmul.f32 %v445, %v419
    %s450 = scalar_lea.vmem %s3, 64
    %v451 = vld [vmem:[%s450] sm:$0xff]
    %v452 = vld [vmem:[%s450 + $0x8] sm:$0xff]
    %v453 = vld [vmem:[%s450 + $0x10] sm:$0xff]
    %v454 = vld [vmem:[%s450 + $0x18] sm:$0xff]
    %v456 = vsel %vm303, %v451, 0
    %v459 = vsel %vm303, %v452, 0
    %v462 = vsel %vm303, %v453, 0
    %v465 = vsel %vm303, %v454, 0
    %467 = vmatprep.subr.mxu0 0.0
    %468 = vmatpush1.msra.mxu0 %v446
    %469 = vmatprep.subr.mxu0 0.0
    %470 = vmatpush1.msra.mxu0 %v447
    %471 = vmatprep.subr.mxu0 0.0
    %472 = vmatpush1.msra.mxu0 %v448
    %473 = vmatprep.subr.mxu0 0.0
    %474 = vmatpush1.msra.mxu0 %v449
    %475 = vmatprep.subr.mxu0 0.0
    %476 = vmatpush1.msra.mxu0 0.0
    %477 = vmatprep.subr.mxu0 0.0
    %478 = vmatpush1.msra.mxu0 0.0
    %479 = vmatprep.subr.mxu0 0.0
    %480 = vmatpush1.msra.mxu0 0.0
    %481 = vmatprep.subr.mxu0 0.0
    %482 = vmatpush1.msra.mxu0 0.0
    %483 = vmatprep.subr.mxu0 0.0
    %484 = vmatpush1.msra.mxu0 0.0
    %485 = vmatprep.subr.mxu0 0.0
    %486 = vmatpush1.msra.mxu0 0.0
    %487 = vmatprep.subr.mxu0 0.0
    %488 = vmatpush1.msra.mxu0 0.0
    %489 = vmatprep.subr.mxu0 0.0
    %490 = vmatpush1.msra.mxu0 0.0
    %491 = vmatprep.subr.mxu0 0.0
    %492 = vmatpush1.msra.mxu0 0.0
    %493 = vmatprep.subr.mxu0 0.0
    %494 = vmatpush1.msra.mxu0 0.0
    %495 = vmatprep.subr.mxu0 0.0
    %496 = vmatpush1.msra.mxu0 0.0
    %497 = vmatprep.subr.mxu0 0.0
    %498 = vmatpush1.msra.mxu0 0.0
    %499 = vmatprep.subr.mxu0 0.0
    %500 = vmatpush1.msra.mxu0 0.0
    %501 = vmatprep.subr.mxu0 0.0
    %502 = vmatpush1.msra.mxu0 0.0
    %503 = vmatprep.subr.mxu0 0.0
    %504 = vmatpush1.msra.mxu0 0.0
    %505 = vmatprep.subr.mxu0 0.0
    %506 = vmatpush1.msra.mxu0 0.0
    %507 = vmatprep.subr.mxu0 0.0
    %508 = vmatpush1.msra.mxu0 0.0
    %509 = vmatprep.subr.mxu0 0.0
    %510 = vmatpush1.msra.mxu0 0.0
    %511 = vmatprep.subr.mxu0 0.0
    %512 = vmatpush1.msra.mxu0 0.0
    %513 = vmatprep.subr.mxu0 0.0
    %514 = vmatpush1.msra.mxu0 0.0
    %515 = vmatprep.subr.mxu0 0.0
    %516 = vmatpush1.msra.mxu0 0.0
    %517 = vmatprep.subr.mxu0 0.0
    %518 = vmatpush1.msra.mxu0 0.0
    %519 = vmatprep.subr.mxu0 0.0
    %520 = vmatpush1.msra.mxu0 0.0
    %521 = vmatprep.subr.mxu0 0.0
    %522 = vmatpush1.msra.mxu0 0.0
    %523 = vmatprep.subr.mxu0 0.0
    %524 = vmatpush1.msra.mxu0 0.0
    %525 = vmatprep.subr.mxu0 0.0
    %526 = vmatpush1.msra.mxu0 0.0
    %527 = vmatprep.subr.mxu0 0.0
    %528 = vmatpush1.msra.mxu0 0.0
    %529 = vmatprep.subr.mxu0 0.0
    %530 = vmatpush1.msra.mxu0 0.0
    %531 = vmatprep.mubr.f32.mxu0 0.0
    %532 = vmatmul.mubr.f32.gmra.mrb[0].mxu0 %v456
    %v533 = vpop.f32.mrb[0].mxu0
    %v534 = vadd.f32 0.0, %v533
    %v535 = vpop.f32.mrb[0].mxu0
    %536 = vmatprep.mubr.f32.mxu0 0.0
    %537 = vmatmul.mubr.f32.gmra.mrb[0].mxu0 %v459
    %v538 = vpop.f32.mrb[0].mxu0
    %v539 = vadd.f32 0.0, %v538
    %v540 = vpop.f32.mrb[0].mxu0
    %541 = vmatprep.mubr.f32.mxu0 0.0
    %542 = vmatmul.mubr.f32.gmra.mrb[0].mxu0 %v462
    %v543 = vpop.f32.mrb[0].mxu0
    %v544 = vadd.f32 0.0, %v543
    %v545 = vpop.f32.mrb[0].mxu0
    %546 = vmatprep.mubr.f32.mxu0 0.0
    %547 = vmatmul.mubr.f32.gmra.mrb[0].mxu0 %v465
    %v548 = vpop.f32.mrb[0].mxu0
    %v549 = vadd.f32 0.0, %v548
    %v550 = vpop.f32.mrb[0].mxu0
    %551 = vdwg.mxu0
    %v552 = vxor.u32 %v257, 2147483648
    %v553 = vxor.u32 %v262, 2147483648
    %v554 = vxor.u32 %v267, 2147483648
    %v555 = vxor.u32 %v272, 2147483648
    %v556 = vmul.f32 %v552, 1.442695
    %v557 = vpow.pop %v556
    %v558 = vmul.f32 %v553, 1.442695
    %v559 = vpow.pop %v558
    %v560 = vmul.f32 %v554, 1.442695
    %v561 = vpow.pop %v560
    %v562 = vmul.f32 %v555, 1.442695
    %v563 = vpow.pop %v562
    %v564 = vadd.f32 %v557, 1.0
    %v565 = vadd.f32 %v559, 1.0
    %v566 = vadd.f32 %v561, 1.0
    %v567 = vadd.f32 %v563, 1.0
    %v568 = vrcp.pop %v564
    %v569 = vmul.f32 1.0, %v568
    %v570 = vrcp.pop %v565
    %v571 = vmul.f32 1.0, %v570
    %v572 = vrcp.pop %v566
    %v573 = vmul.f32 1.0, %v572
    %v574 = vrcp.pop %v567
    %v575 = vmul.f32 1.0, %v574
    %v576 = vmul.f32 %v569, %v534
    %v577 = vmul.f32 %v571, %v539
    %v578 = vmul.f32 %v573, %v544
    %v579 = vmul.f32 %v575, %v549
    %v580 = vld [vmem:[%s4] sm:$0xff]
    %v581 = vld [vmem:[%s4 + $0x8] sm:$0xff]
    %v582 = vld [vmem:[%s4 + $0x10] sm:$0xff]
    %v583 = vld [vmem:[%s4 + $0x18] sm:$0xff]
    %585 = vset.pattern.permute.xlu0 0
    %586 = vperm.xlu0 %585, %v580
    %v587 = vpop.permute.xlu0 %586
    %590 = vset.pattern.permute.xlu0 0
    %591 = vperm.xlu0 %590, %v581
    %v592 = vpop.permute.xlu0 %591
    %595 = vset.pattern.permute.xlu0 0
    %596 = vperm.xlu0 %595, %v582
    %v597 = vpop.permute.xlu0 %596
    %600 = vset.pattern.permute.xlu0 0
    %601 = vperm.xlu0 %600, %v583
    %v602 = vpop.permute.xlu0 %601
    %v604 = vmul.f32 %v576, %v587
    %v605 = vmul.f32 %v577, %v592
    %v606 = vmul.f32 %v578, %v597
    %v607 = vmul.f32 %v579, %v602
    %vm608 = vcmask 64512
    %v609 = vsel %vm608, %v604, 0.0
    %v610 = vsel %vm608, %v605, 0.0
    %v611 = vadd.f32 %v609, %v610
    %v612 = vsel %vm608, %v606, 0.0
    %v613 = vadd.f32 %v611, %v612
    %v614 = vsel %vm608, %v607, 0.0
    %v615 = vadd.f32 %v613, %v614
    %v616 = vrot.slane %v615, 4
    %v617 = vadd.f32 %v615, %v616
    %v618 = vrot.slane %v617, 2
    %v619 = vadd.f32 %v617, %v618
    %v620 = vrot.slane %v619, 1
    %v621 = vadd.f32 %v619, %v620
    %s622 = sld [smem:[#allocation2]]
    %v623 = vstv %s622
    %v624 = vadd.f32 %v621, %v623
    %v625 = vxor.u32 %v624, 2147483648
    %v626 = vmul.f32 %v625, 1.442695
    %v627 = vpow.pop %v626
    %v628 = vadd.f32 %v627, 1.0
    %v629 = vrcp.pop %v628
    %v630 = vmul.f32 1.0, %v629
    %vm631 = vcmask 57344
    %632 = vst.msk [vmem:[#allocation3] sm:$0x1] %vm631, %v630
    // Predicated region
    $region26: #{tpu_custom_call.1} parent=1 // pred_check
      _
    $region27: #{tpu_custom_call.1} parent=1 // pred_check_branch
      %634 = sbr.rel (0) target = $region29
    $region28: #{tpu_custom_call.1} parent=1 // pred_region
      %s636 = ssub.s32 16, 16
      %637 = vsyncadd [#allocation4], %s636
      %s639 = sshll.u32 [#allocation3], 4
      %s640 = int_to_ptr.vmem [resolvable:$true] %s639
      %642 = dma.vmem_to_hbm [thread:$0]  %s640, 16, %s6, [#allocation4]
    $region29: #{tpu_custom_call.1} parent=1 // pred_fallthru
      _
    // Predicated region
    $region30: #{tpu_custom_call.1} parent=1 // pred_check
      _
    $region31: #{tpu_custom_call.1} parent=1 // pred_check_branch
      %644 = sbr.rel (0) target = $region33
    $region32: #{tpu_custom_call.1} parent=1 // pred_region
      %645 = dma.done [#allocation4], 16
    $region33: #{tpu_custom_call.1} parent=1 // pred_fallthru
      _
    %646 = vsyncpa [#allocation4], 1

</llo_original>
